<compile_context>
chip_gen: v6e
topology: v6e:2x2x1
jax: 0.10.0
libtpu: 0.0.40
codegen_flags: <defaults>
</compile_context>

<pallas_src>
import math

import jax
import jax.numpy as jnp
from jax import lax
from jax.experimental import pallas as pl
from jax.experimental.pallas import tpu as pltpu

_EPS = 1e-8  # matches torch.nn.functional.cosine_similarity default eps


def _round_up(x: int, m: int) -> int:
    return (x + m - 1) // m * m


def _pick_tile(pref: int, total: int) -> int:
    # total is always a multiple of 128, so this always returns >= 128
    for t in (pref, 512, 256, 128, total):
        if t <= total and total % t == 0:
            return t
    return total


def _make_logden_kernel(*, tm, tk, n_valid, n_padded, inv_beta):
    # Zero-padded key columns each contribute exp(0 - 1/beta) to the shifted
    # row sum -> remove them with one constant subtraction at finalize.
    pad_corr = float(n_padded - n_valid) * math.exp(-inv_beta)

    def kernel(q_ref, kt_ref, out_ref, cmr_ref):
        k = pl.program_id(1)

        @pl.when(k == 0)
        def _init():
            out_ref[...] = jnp.zeros_like(out_ref)
            # (col - row) is grid-step independent within a row tile; keep it
            # in scratch so the hot loop only does one compare per element.
            cmr_ref[...] = (
                lax.broadcasted_iota(jnp.int32, (tm, tk), 1)
                - lax.broadcasted_iota(jnp.int32, (tm, tk), 0))

        # Standard (TM, Dp) @ (Dp, TK) contraction, lane-dense along keys.
        # Keys were pre-scaled by 1/beta, so s == cos / beta.
        s = lax.dot_general(q_ref[...], kt_ref[...],
                            dimension_numbers=(((1,), (0,)), ((), ())),
                            preferred_element_type=jnp.float32)
        # Shift by the known maximum (cos <= 1) so exp never overflows.
        e = jnp.exp(s - inv_beta)
        # Exact diagonal exclusion: global col == global row
        #   <=>  (c - r) == i*tm - k*tk
        diff = pl.program_id(0) * tm - k * tk
        e = jnp.where(cmr_ref[...] == diff, 0.0, e)
        out_ref[...] += jnp.sum(e, axis=1, keepdims=True)

        @pl.when(k == pl.num_programs(1) - 1)
        def _finalize():
            den = jnp.maximum(out_ref[...] - pad_corr, 1e-30)
            out_ref[...] = jnp.log(den) + inv_beta   # = log den_i (unshifted)

    return kernel


def _pallas_logden(qc, kt, *, n_valid, inv_beta, tm, tk, vmem_limit, cost):
    n_padded, dp = qc.shape
    kernel = _make_logden_kernel(tm=tm, tk=tk, n_valid=n_valid,
                                 n_padded=n_padded, inv_beta=inv_beta)
    return pl.pallas_call(
        kernel,
        out_shape=jax.ShapeDtypeStruct((n_padded, 1), jnp.float32),
        grid_spec=pltpu.PrefetchScalarGridSpec(
            num_scalar_prefetch=0,
            grid=(n_padded // tm, n_padded // tk),
            in_specs=[
                pl.BlockSpec((tm, dp), lambda i, k: (i, 0)),   # query rows
                pl.BlockSpec((dp, tk), lambda i, k: (0, k)),   # key columns
            ],
            out_specs=pl.BlockSpec((tm, 1), lambda i, k: (i, 0)),
            scratch_shapes=[pltpu.VMEM((tm, tk), jnp.int32)],  # col - row
        ),
        # Row tiles are independent -> "parallel" (uses both v7x TensorCores);
        # the key axis reduces into the resident output block -> "arbitrary".
        compiler_params=pltpu.CompilerParams(
            dimension_semantics=("parallel", "arbitrary"),
            vmem_limit_bytes=vmem_limit,
        ),
        cost_estimate=cost,
    )(qc, kt)


def contrastive_loss_v2_pallas(x1, x2, beta=0.08, *, row_tile=256,
                               key_tile=512, use_bf16_mxu=False):
    """Pallas implementation of ContrastiveLossV2(s=beta)(x1, x2) -> scalar."""
    assert x1.shape == x2.shape and x1.ndim == 2
    b, d = x1.shape
    n = 2 * b
    dp = _round_up(d, 128)          # lane-dense features (zero pad)
    np_ = _round_up(n, 128)         # padded row / key count
    tm = _pick_tile(row_tile, np_)  # multiple of 128 (v5e MXU friendly)
    tk = _pick_tile(key_tile, np_)
    inv_beta = 1.0 / float(beta)

    # ---- O(N*D) prep, once (negligible vs the O(N^2*D) kernel). ------------
    x1f = x1.astype(jnp.float32)
    x2f = x2.astype(jnp.float32)
    inv1 = lax.rsqrt(jnp.maximum(jnp.sum(x1f * x1f, -1, keepdims=True),
                                 _EPS * _EPS))
    inv2 = lax.rsqrt(jnp.maximum(jnp.sum(x2f * x2f, -1, keepdims=True),
                                 _EPS * _EPS))
    x1n = x1f * inv1
    x2n = x2f * inv2
    pos = jnp.sum(x1n * x2n)                        # sum_i cos(x1_i, x2_i)

    q = jnp.concatenate([x1n, x2n], axis=0)         # (N, D) normalized rows
    q = jnp.pad(q, ((0, np_ - n), (0, dp - d)))     # zero pad rows/features

    cdtype = jnp.bfloat16 if use_bf16_mxu else jnp.float32
    qc = q.astype(cdtype)                           # (Np, Dp) queries
    kt = (q * inv_beta).T.astype(cdtype)            # (Dp, Np) scaled keys

    # ---- VMEM budget / cost hints. -----------------------------------------
    itm = jnp.dtype(cdtype).itemsize
    est = (2 * tm * dp * itm + 2 * dp * tk * itm + 2 * tm * 4
           + 4 * tm * tk * 4)
    # Leave headroom below the v7x 64 MiB physical VMEM (cap at 48 MiB).
    vmem_limit = int(min(48 * 2**20, max(32 * 2**20, 2 * est)))
    cost = pl.CostEstimate(
        flops=2 * np_ * np_ * dp + 4 * np_ * np_,
        transcendentals=np_ * np_ + np_,
        bytes_accessed=np_ * dp * itm + (np_ // tm) * np_ * dp * itm + np_ * 4,
    )

    logden = _pallas_logden(qc, kt, n_valid=n, inv_beta=inv_beta,
                            tm=tm, tk=tk, vmem_limit=vmem_limit, cost=cost)

    # Padded query rows are simply dropped here (no in-kernel row masking).
    loss = jnp.sum(logden[:n, 0]) / n - (2.0 / (n * beta)) * pos
    return loss


def _reference_loss(x1, x2, beta=0.08):
    """Plain-JAX reference mirroring the PyTorch code, for a sanity check."""
    x12 = jnp.concatenate([x1, x2], axis=0).astype(jnp.float32)
    x21 = jnp.concatenate([x2, x1], axis=0).astype(jnp.float32)
    a = x12 / jnp.maximum(jnp.linalg.norm(x12, axis=-1, keepdims=True), _EPS)
    b = x21 / jnp.maximum(jnp.linalg.norm(x21, axis=-1, keepdims=True), _EPS)
    cos_mat = (a @ a.T) / beta
    mask = 1.0 - jnp.eye(a.shape[0], dtype=jnp.float32)
    den = jnp.sum(jnp.exp(cos_mat) * mask, axis=1)
    num = jnp.exp(jnp.sum(a * b, axis=-1) / beta)
    return -jnp.mean(jnp.log(num / den))


if __name__ == "__main__":
    # Small deterministic inputs: batch=8 pairs, embedding dim=32 -> N = 16.
    key = jax.random.PRNGKey(0)
    k1, k2 = jax.random.split(key)
    B, D = 8, 32
    x1 = jax.random.normal(k1, (B, D), dtype=jnp.float32)
    x2 = jax.random.normal(k2, (B, D), dtype=jnp.float32)

    loss = contrastive_loss_v2_pallas(x1, x2, beta=0.08)
    loss = jax.block_until_ready(loss)

    ref = _reference_loss(x1, x2, beta=0.08)
    assert jnp.allclose(loss, ref, rtol=1e-4, atol=1e-4), (loss, ref)

    print("KERNEL_OK")
</pallas_src>

<mosaic_0001>
module attributes {stable_mosaic.version = 11 : i64} {
  func.func @kernel(%arg0: i32, %arg1: i32, %arg2: memref<128x128xf32, #tpu.memory_space<vmem>>, %arg3: memref<128x128xf32, #tpu.memory_space<vmem>>, %arg4: memref<128x1xf32, #tpu.memory_space<vmem>>, %arg5: memref<128x128xi32, #tpu.memory_space<vmem>>) attributes {dimension_semantics = [#tpu.dimension_semantics<parallel>, #tpu.dimension_semantics<arbitrary>], iteration_bounds = array<i64: 1, 1>, scalar_prefetch = 0 : i64, scratch_operands = 1 : i64, tpu.core_type = #tpu.core_type<tc>, window_params = [{transform_indices = @transform_0, window_bounds = array<i64: 128, 128>}, {transform_indices = @transform_1, window_bounds = array<i64: 128, 128>}, {transform_indices = @transform_2, window_bounds = array<i64: 128, 1>}]} {
    %c0_i32 = arith.constant 0 : i32
    %0 = arith.cmpi eq, %arg1, %c0_i32 : i32
    %1 = arith.extui %0 : i1 to i32
    %c0_i32_0 = arith.constant 0 : i32
    %2 = arith.cmpi ne, %1, %c0_i32_0 : i32
    scf.if %2 {
      %cst_16 = arith.constant 0.000000e+00 : f32
      %25 = vector.broadcast %cst_16 : f32 to vector<128x1xf32>
      %c0_17 = arith.constant 0 : index
      %c0_18 = arith.constant 0 : index
      %26 = vector.load %arg4[%c0_17, %c0_18] : memref<128x1xf32, #tpu.memory_space<vmem>>, vector<128x1xf32>
      tpu.vector_store %arg4[%c0_17, %c0_18], %25 {strides = array<i32>} : memref<128x1xf32, #tpu.memory_space<vmem>>, vector<128x1xf32>,
      %27 = tpu.iota {dimensions = array<i32: 1>} : vector<128x128xi32>
      %28 = tpu.iota {dimensions = array<i32: 0>} : vector<128x128xi32>
      %29 = arith.subi %27, %28 : vector<128x128xi32>
      %c0_19 = arith.constant 0 : index
      %c0_20 = arith.constant 0 : index
      %30 = vector.load %arg5[%c0_19, %c0_20] : memref<128x128xi32, #tpu.memory_space<vmem>>, vector<128x128xi32>
      tpu.vector_store %arg5[%c0_19, %c0_20], %29 {strides = array<i32>} : memref<128x128xi32, #tpu.memory_space<vmem>>, vector<128x128xi32>,
    } else {
    }
    %c0 = arith.constant 0 : index
    %c0_1 = arith.constant 0 : index
    %3 = vector.load %arg2[%c0, %c0_1] : memref<128x128xf32, #tpu.memory_space<vmem>>, vector<128x128xf32>
    %c0_2 = arith.constant 0 : index
    %c0_3 = arith.constant 0 : index
    %4 = vector.load %arg3[%c0_2, %c0_3] : memref<128x128xf32, #tpu.memory_space<vmem>>, vector<128x128xf32>
    %cst = arith.constant dense<0.000000e+00> : vector<128x128xf32>
    %5 = tpu.matmul %3, %4, %cst {dimension_numbers = #tpu.dot_dimension_numbers<[1], [0], [0], [1], [0, 0, 1, 1], [], []>} : vector<128x128xf32>, vector<128x128xf32>, vector<128x128xf32> -> vector<128x128xf32>
    %cst_4 = arith.constant 1.250000e+01 : f32
    %6 = vector.broadcast %cst_4 : f32 to vector<128x128xf32>
    %7 = arith.subf %5, %6 : vector<128x128xf32>
    %8 = math.exp %7 : vector<128x128xf32>
    %c128_i32 = arith.constant 128 : i32
    %9 = arith.muli %arg0, %c128_i32 : i32
    %c128_i32_5 = arith.constant 128 : i32
    %10 = arith.muli %arg1, %c128_i32_5 : i32
    %11 = arith.subi %9, %10 : i32
    %c0_6 = arith.constant 0 : index
    %c0_7 = arith.constant 0 : index
    %12 = vector.load %arg5[%c0_6, %c0_7] : memref<128x128xi32, #tpu.memory_space<vmem>>, vector<128x128xi32>
    %13 = vector.broadcast %11 : i32 to vector<128x128xi32>
    %14 = arith.cmpi eq, %12, %13 : vector<128x128xi32>
    %cst_8 = arith.constant 0.000000e+00 : f32
    %15 = vector.broadcast %cst_8 : f32 to vector<128x128xf32>
    %16 = arith.select %14, %15, %8 : vector<128x128xi1>, vector<128x128xf32>
    %c0_9 = arith.constant 0 : index
    %c0_10 = arith.constant 0 : index
    %17 = vector.load %arg4[%c0_9, %c0_10] : memref<128x1xf32, #tpu.memory_space<vmem>>, vector<128x1xf32>
    %cst_11 = arith.constant dense<0.000000e+00> : vector<128xf32>
    %18 = vector.multi_reduction <add>, %16, %cst_11 [1] : vector<128x128xf32> to vector<128xf32>
    %19 = vector.shape_cast %18 : vector<128xf32> to vector<128x1xf32>
    %20 = arith.addf %17, %19 : vector<128x1xf32>
    %c0_12 = arith.constant 0 : index
    %c0_13 = arith.constant 0 : index
    %21 = vector.load %arg4[%c0_12, %c0_13] : memref<128x1xf32, #tpu.memory_space<vmem>>, vector<128x1xf32>
    tpu.vector_store %arg4[%c0_12, %c0_13], %20 {strides = array<i32>} : memref<128x1xf32, #tpu.memory_space<vmem>>, vector<128x1xf32>,
    %c0_i32_14 = arith.constant 0 : i32
    %22 = arith.cmpi eq, %arg1, %c0_i32_14 : i32
    %23 = arith.extui %22 : i1 to i32
    %c0_i32_15 = arith.constant 0 : i32
    %24 = arith.cmpi ne, %23, %c0_i32_15 : i32
    scf.if %24 {
      %c0_16 = arith.constant 0 : index
      %c0_17 = arith.constant 0 : index
      %25 = vector.load %arg4[%c0_16, %c0_17] : memref<128x1xf32, #tpu.memory_space<vmem>>, vector<128x1xf32>
      %cst_18 = arith.constant 4.17385163E-4 : f32
      %26 = vector.broadcast %cst_18 : f32 to vector<128x1xf32>
      %27 = arith.subf %25, %26 : vector<128x1xf32>
      %cst_19 = arith.constant 1.000000e-30 : f32
      %28 = vector.broadcast %cst_19 : f32 to vector<128x1xf32>
      %29 = arith.maximumf %27, %28 : vector<128x1xf32>
      %30 = math.log %29 : vector<128x1xf32>
      %cst_20 = arith.constant 1.250000e+01 : f32
      %31 = vector.broadcast %cst_20 : f32 to vector<128x1xf32>
      %32 = arith.addf %30, %31 : vector<128x1xf32>
      %c0_21 = arith.constant 0 : index
      %c0_22 = arith.constant 0 : index
      %33 = vector.load %arg4[%c0_21, %c0_22] : memref<128x1xf32, #tpu.memory_space<vmem>>, vector<128x1xf32>
      tpu.vector_store %arg4[%c0_21, %c0_22], %32 {strides = array<i32>} : memref<128x1xf32, #tpu.memory_space<vmem>>, vector<128x1xf32>,
    } else {
    }
    return
  }
  func.func @transform_0(%arg0: i32, %arg1: i32) -> (i32, i32) {
    %c0_i32 = arith.constant 0 : i32
    %c0_i32_0 = arith.constant 0 : i32
    return %arg0, %c0_i32 : i32, i32
  }
  func.func @transform_1(%arg0: i32, %arg1: i32) -> (i32, i32) {
    %c0_i32 = arith.constant 0 : i32
    %c0_i32_0 = arith.constant 0 : i32
    return %c0_i32, %arg1 : i32, i32
  }
  func.func @transform_2(%arg0: i32, %arg1: i32) -> (i32, i32) {
    %c0_i32 = arith.constant 0 : i32
    %c0_i32_0 = arith.constant 0 : i32
    return %arg0, %c0_i32 : i32, i32
  }
}

</mosaic_0001>

<llo_original>
// kernel: tpu_custom_call.1
$region0: #{tpu_custom_call.1}
  #allocation0 [shape = 'u32[]', space=smem, size = 0x4, offset = 0x4, fixed_abs, tag = 'smem constant byte address 0x4 - core index']
  #allocation1 [shape = 'u32[144,128]{1,0:T(1,128)}', space=vmem, size = 0x12000, scoped, tag = 'internal scratch']
  #allocation2 [shape = 's32[128,128]{1,0:T(8,128)}', space=vmem, size = 0x10000, scoped, tag = 'scratch operand']
  %s0 = inlined_call_operand.hbm [shape: f32[128,128], index: 0, kind: input, shape index: {}]
  %s1 = inlined_call_operand.hbm [shape: f32[128,128], index: 1, kind: input, shape index: {}]
  %s2 = inlined_call_operand.vmem [shape: f32[128,1], index: 2, kind: output, shape index: {}]
  %s3 = sld [smem:[#allocation0]]
  $region34: #{tpu_custom_call.1} parent=0
    _
  %s5 = ssub.s32 1, %s3
  %s6 = scalar_select 0, %s5, %s3
  $region1: #{tpu_custom_call.1} parent=0
    #allocation3 [shape = 'u8[65536]{0}', space=vmem, size = 0x10000, scoped, tag = 'input window, operand 0, single buffered']
    #allocation4 [shape = 's32[1]{0}', space=sflag, size = 0x4, scoped, tag = 'scoped memory for tpu_custom_call.1']
    #allocation5 [shape = 'u8[65536]{0}', space=vmem, size = 0x10000, scoped, tag = 'input window, operand 1, single buffered']
    #allocation6 [shape = 's32[1]{0}', space=sflag, size = 0x4, scoped, tag = 'scoped memory for tpu_custom_call.1']
    %7 = vsyncpa [#allocation4], 0
    %8 = vsyncpa [#allocation6], 0
    // Predicated region
    $region2: #{tpu_custom_call.1} parent=1 // pred_check
      _
    $region3: #{tpu_custom_call.1} parent=1 // pred_check_branch
      %10 = sbr.rel (0) target = $region5
    $region4: #{tpu_custom_call.1} parent=1 // pred_region
      %s12 = ssub.s32 2048, 2048
      %13 = vsyncadd [#allocation4], %s12
      %s14 = sshll.u32 [#allocation3], 4
      %s15 = int_to_ptr.vmem [resolvable:$true] %s14
      %20 = dma.hbm_to_vmem [thread:$0]  %s0, 2048, %s15, [#allocation4], 128, 128, 8
    $region5: #{tpu_custom_call.1} parent=1 // pred_fallthru
      _
    // Predicated region
    $region6: #{tpu_custom_call.1} parent=1 // pred_check
      _
    $region7: #{tpu_custom_call.1} parent=1 // pred_check_branch
      %22 = sbr.rel (0) target = $region9
    $region8: #{tpu_custom_call.1} parent=1 // pred_region
      %s24 = ssub.s32 2048, 2048
      %25 = vsyncadd [#allocation6], %s24
      %s26 = sshll.u32 [#allocation5], 4
      %s27 = int_to_ptr.vmem [resolvable:$true] %s26
      %32 = dma.hbm_to_vmem [thread:$0]  %s1, 2048, %s27, [#allocation6], 128, 128, 8
    $region9: #{tpu_custom_call.1} parent=1 // pred_fallthru
      _
    // Predicated region
    $region10: #{tpu_custom_call.1} parent=1 // pred_check
      _
    $region11: #{tpu_custom_call.1} parent=1 // pred_check_branch
      %34 = sbr.rel (0) target = $region13
    $region12: #{tpu_custom_call.1} parent=1 // pred_region
      %35 = dma.done [#allocation4], 2048
    $region13: #{tpu_custom_call.1} parent=1 // pred_fallthru
      _
    // Predicated region
    $region14: #{tpu_custom_call.1} parent=1 // pred_check
      _
    $region15: #{tpu_custom_call.1} parent=1 // pred_check_branch
      %37 = sbr.rel (0) target = $region17
    $region16: #{tpu_custom_call.1} parent=1 // pred_region
      %38 = dma.done [#allocation6], 2048
    $region17: #{tpu_custom_call.1} parent=1 // pred_fallthru
      _
    %p39 = scmp.eq.s32.totalorder 0, 0
    // Predicated region
    $region18: #{tpu_custom_call.1} parent=1 // pred_check
      %p40 = pneg %p39
    $region19: #{tpu_custom_call.1} parent=1 // pred_check_branch
      %42 = sbr.rel (%p40) target = $region21
    $region20: #{tpu_custom_call.1} parent=1 // pred_region
      %vm43 = vcmask 7168
      %44 = vst.msk [vmem:[%s2] sm:$0xff] %vm43, 0.0
      %45 = vst.msk [vmem:[%s2 + $0x8] sm:$0xff] %vm43, 0.0
      %46 = vst.msk [vmem:[%s2 + $0x10] sm:$0xff] %vm43, 0.0
      %47 = vst.msk [vmem:[%s2 + $0x18] sm:$0xff] %vm43, 0.0
      %48 = vst.msk [vmem:[%s2 + $0x20] sm:$0xff] %vm43, 0.0
      %49 = vst.msk [vmem:[%s2 + $0x28] sm:$0xff] %vm43, 0.0
      %50 = vst.msk [vmem:[%s2 + $0x30] sm:$0xff] %vm43, 0.0
      %51 = vst.msk [vmem:[%s2 + $0x38] sm:$0xff] %vm43, 0.0
      %52 = vst.msk [vmem:[%s2 + $0x40] sm:$0xff] %vm43, 0.0
      %53 = vst.msk [vmem:[%s2 + $0x48] sm:$0xff] %vm43, 0.0
      %54 = vst.msk [vmem:[%s2 + $0x50] sm:$0xff] %vm43, 0.0
      %55 = vst.msk [vmem:[%s2 + $0x58] sm:$0xff] %vm43, 0.0
      %56 = vst.msk [vmem:[%s2 + $0x60] sm:$0xff] %vm43, 0.0
      %57 = vst.msk [vmem:[%s2 + $0x68] sm:$0xff] %vm43, 0.0
      %58 = vst.msk [vmem:[%s2 + $0x70] sm:$0xff] %vm43, 0.0
      %59 = vst.msk [vmem:[%s2 + $0x78] sm:$0xff] %vm43, 0.0
      %v60 = vlaneseq
      %v61 = vand.u32 %v60, 127
      %v62 = vlaneseq
      %v63 = vshrl.u32 %v62, 7
      %v64 = vadd.s32 %v63, 8
      %v65 = vadd.s32 %v63, 16
      %v66 = vadd.s32 %v63, 24
      %v67 = vadd.s32 %v63, 32
      %v68 = vadd.s32 %v63, 40
      %v69 = vadd.s32 %v63, 48
      %v70 = vadd.s32 %v63, 56
      %v71 = vadd.s32 %v63, 64
      %v72 = vadd.s32 %v63, 72
      %v73 = vadd.s32 %v63, 80
      %v74 = vadd.s32 %v63, 88
      %v75 = vadd.s32 %v63, 96
      %v76 = vadd.s32 %v63, 104
      %v77 = vadd.s32 %v63, 112
      %v78 = vadd.s32 %v63, 120
      %v79 = vsub.s32 %v61, %v63
      %v80 = vsub.s32 %v61, %v64
      %v81 = vsub.s32 %v61, %v65
      %v82 = vsub.s32 %v61, %v66
      %v83 = vsub.s32 %v61, %v67
      %v84 = vsub.s32 %v61, %v68
      %v85 = vsub.s32 %v61, %v69
      %v86 = vsub.s32 %v61, %v70
      %v87 = vsub.s32 %v61, %v71
      %v88 = vsub.s32 %v61, %v72
      %v89 = vsub.s32 %v61, %v73
      %v90 = vsub.s32 %v61, %v74
      %v91 = vsub.s32 %v61, %v75
      %v92 = vsub.s32 %v61, %v76
      %v93 = vsub.s32 %v61, %v77
      %v94 = vsub.s32 %v61, %v78
      %95 = vst [vmem:[#allocation2] sm:$0xff] %v79
      %96 = vst [vmem:[#allocation2 + $0x8] sm:$0xff] %v80
      %97 = vst [vmem:[#allocation2 + $0x10] sm:$0xff] %v81
      %98 = vst [vmem:[#allocation2 + $0x18] sm:$0xff] %v82
      %99 = vst [vmem:[#allocation2 + $0x20] sm:$0xff] %v83
      %100 = vst [vmem:[#allocation2 + $0x28] sm:$0xff] %v84
      %101 = vst [vmem:[#allocation2 + $0x30] sm:$0xff] %v85
      %102 = vst [vmem:[#allocation2 + $0x38] sm:$0xff] %v86
      %103 = vst [vmem:[#allocation2 + $0x40] sm:$0xff] %v87
      %104 = vst [vmem:[#allocation2 + $0x48] sm:$0xff] %v88
      %105 = vst [vmem:[#allocation2 + $0x50] sm:$0xff] %v89
      %106 = vst [vmem:[#allocation2 + $0x58] sm:$0xff] %v90
      %107 = vst [vmem:[#allocation2 + $0x60] sm:$0xff] %v91
      %108 = vst [vmem:[#allocation2 + $0x68] sm:$0xff] %v92
      %109 = vst [vmem:[#allocation2 + $0x70] sm:$0xff] %v93
      %110 = vst [vmem:[#allocation2 + $0x78] sm:$0xff] %v94
    $region21: #{tpu_custom_call.1} parent=1 // pred_fallthru
      _
    %v111 = vld [vmem:[#allocation3] sm:$0xff]
    %v112 = vld [vmem:[#allocation3 + $0x8] sm:$0xff]
    %v113 = vld [vmem:[#allocation3 + $0x10] sm:$0xff]
    %v114 = vld [vmem:[#allocation3 + $0x18] sm:$0xff]
    %v115 = vld [vmem:[#allocation3 + $0x20] sm:$0xff]
    %v116 = vld [vmem:[#allocation3 + $0x28] sm:$0xff]
    %v117 = vld [vmem:[#allocation3 + $0x30] sm:$0xff]
    %v118 = vld [vmem:[#allocation3 + $0x38] sm:$0xff]
    %v119 = vld [vmem:[#allocation3 + $0x40] sm:$0xff]
    %v120 = vld [vmem:[#allocation3 + $0x48] sm:$0xff]
    %v121 = vld [vmem:[#allocation3 + $0x50] sm:$0xff]
    %v122 = vld [vmem:[#allocation3 + $0x58] sm:$0xff]
    %v123 = vld [vmem:[#allocation3 + $0x60] sm:$0xff]
    %v124 = vld [vmem:[#allocation3 + $0x68] sm:$0xff]
    %v125 = vld [vmem:[#allocation3 + $0x70] sm:$0xff]
    %v126 = vld [vmem:[#allocation3 + $0x78] sm:$0xff]
    %v127 = vld [vmem:[#allocation5] sm:$0xff]
    %v128 = vld [vmem:[#allocation5 + $0x8] sm:$0xff]
    %v129 = vld [vmem:[#allocation5 + $0x10] sm:$0xff]
    %v130 = vld [vmem:[#allocation5 + $0x18] sm:$0xff]
    %v131 = vld [vmem:[#allocation5 + $0x20] sm:$0xff]
    %v132 = vld [vmem:[#allocation5 + $0x28] sm:$0xff]
    %v133 = vld [vmem:[#allocation5 + $0x30] sm:$0xff]
    %v134 = vld [vmem:[#allocation5 + $0x38] sm:$0xff]
    %v135 = vld [vmem:[#allocation5 + $0x40] sm:$0xff]
    %v136 = vld [vmem:[#allocation5 + $0x48] sm:$0xff]
    %v137 = vld [vmem:[#allocation5 + $0x50] sm:$0xff]
    %v138 = vld [vmem:[#allocation5 + $0x58] sm:$0xff]
    %v139 = vld [vmem:[#allocation5 + $0x60] sm:$0xff]
    %v140 = vld [vmem:[#allocation5 + $0x68] sm:$0xff]
    %v141 = vld [vmem:[#allocation5 + $0x70] sm:$0xff]
    %v142 = vld [vmem:[#allocation5 + $0x78] sm:$0xff]
    %143 = vmatprep.subr.mxu0 0.0
    %144 = vmatpush1.msra.mxu0 %v142
    %145 = vmatprep.subr.mxu0 0.0
    %146 = vmatpush1.msra.mxu0 %v141
    %147 = vmatprep.subr.mxu0 0.0
    %148 = vmatpush1.msra.mxu0 %v140
    %149 = vmatprep.subr.mxu0 0.0
    %150 = vmatpush1.msra.mxu0 %v139
    %151 = vmatprep.subr.mxu0 0.0
    %152 = vmatpush1.msra.mxu0 %v138
    %153 = vmatprep.subr.mxu0 0.0
    %154 = vmatpush1.msra.mxu0 %v137
    %155 = vmatprep.subr.mxu0 0.0
    %156 = vmatpush1.msra.mxu0 %v136
    %157 = vmatprep.subr.mxu0 0.0
    %158 = vmatpush1.msra.mxu0 %v135
    %159 = vmatprep.subr.mxu0 0.0
    %160 = vmatpush1.msra.mxu0 %v134
    %161 = vmatprep.subr.mxu0 0.0
    %162 = vmatpush1.msra.mxu0 %v133
    %163 = vmatprep.subr.mxu0 0.0
    %164 = vmatpush1.msra.mxu0 %v132
    %165 = vmatprep.subr.mxu0 0.0
    %166 = vmatpush1.msra.mxu0 %v131
    %167 = vmatprep.subr.mxu0 0.0
    %168 = vmatpush1.msra.mxu0 %v130
    %169 = vmatprep.subr.mxu0 0.0
    %170 = vmatpush1.msra.mxu0 %v129
    %171 = vmatprep.subr.mxu0 0.0
    %172 = vmatpush1.msra.mxu0 %v128
    %173 = vmatprep.subr.mxu0 0.0
    %174 = vmatpush1.msra.mxu0 %v127
    %175 = vmatprep.subr.mxu0 0.0
    %176 = vmatpush2.msra.mxu0 0.0
    %177 = vmatprep.subr.mxu0 0.0
    %178 = vmatpush2.msra.mxu0 0.0
    %179 = vmatprep.subr.mxu0 0.0
    %180 = vmatpush2.msra.mxu0 0.0
    %181 = vmatprep.subr.mxu0 0.0
    %182 = vmatpush2.msra.mxu0 0.0
    %183 = vmatprep.subr.mxu0 0.0
    %184 = vmatpush2.msra.mxu0 0.0
    %185 = vmatprep.subr.mxu0 0.0
    %186 = vmatpush2.msra.mxu0 0.0
    %187 = vmatprep.subr.mxu0 0.0
    %188 = vmatpush2.msra.mxu0 0.0
    %189 = vmatprep.subr.mxu0 0.0
    %190 = vmatpush2.msra.mxu0 0.0
    %191 = vmatprep.subr.mxu0 0.0
    %192 = vmatpush2.msra.mxu0 0.0
    %193 = vmatprep.subr.mxu0 0.0
    %194 = vmatpush2.msra.mxu0 0.0
    %195 = vmatprep.subr.mxu0 0.0
    %196 = vmatpush2.msra.mxu0 0.0
    %197 = vmatprep.subr.mxu0 0.0
    %198 = vmatpush2.msra.mxu0 0.0
    %199 = vmatprep.subr.mxu0 0.0
    %200 = vmatpush2.msra.mxu0 0.0
    %201 = vmatprep.subr.mxu0 0.0
    %202 = vmatpush2.msra.mxu0 0.0
    %203 = vmatprep.subr.mxu0 0.0
    %204 = vmatpush2.msra.mxu0 0.0
    %205 = vmatprep.subr.mxu0 0.0
    %206 = vmatpush2.msra.mxu0 0.0
    %207 = vmatprep.mubr.f32.mxu0 0.0
    %208 = vmatmul.mubr.f32.gmra.mxu0 %v111
    %v209 = vpop.f32.mrf.mxu0
    %v210 = vadd.f32 0.0, %v209
    %v211 = vpop.f32.mrf.mxu0
    %212 = vmatprep.mubr.f32.mxu0 0.0
    %213 = vmatmul.mubr.f32.gmra.mxu0 %v112
    %v214 = vpop.f32.mrf.mxu0
    %v215 = vadd.f32 0.0, %v214
    %v216 = vpop.f32.mrf.mxu0
    %217 = vmatprep.mubr.f32.mxu0 0.0
    %218 = vmatmul.mubr.f32.gmra.mxu0 %v113
    %v219 = vpop.f32.mrf.mxu0
    %v220 = vadd.f32 0.0, %v219
    %v221 = vpop.f32.mrf.mxu0
    %222 = vmatprep.mubr.f32.mxu0 0.0
    %223 = vmatmul.mubr.f32.gmra.mxu0 %v114
    %v224 = vpop.f32.mrf.mxu0
    %v225 = vadd.f32 0.0, %v224
    %v226 = vpop.f32.mrf.mxu0
    %227 = vmatprep.mubr.f32.mxu0 0.0
    %228 = vmatmul.mubr.f32.gmra.mxu0 %v115
    %v229 = vpop.f32.mrf.mxu0
    %v230 = vadd.f32 0.0, %v229
    %v231 = vpop.f32.mrf.mxu0
    %232 = vmatprep.mubr.f32.mxu0 0.0
    %233 = vmatmul.mubr.f32.gmra.mxu0 %v116
    %v234 = vpop.f32.mrf.mxu0
    %v235 = vadd.f32 0.0, %v234
    %v236 = vpop.f32.mrf.mxu0
    %237 = vmatprep.mubr.f32.mxu0 0.0
    %238 = vmatmul.mubr.f32.gmra.mxu0 %v117
    %v239 = vpop.f32.mrf.mxu0
    %v240 = vadd.f32 0.0, %v239
    %v241 = vpop.f32.mrf.mxu0
    %242 = vmatprep.mubr.f32.mxu0 0.0
    %243 = vmatmul.mubr.f32.gmra.mxu0 %v118
    %v244 = vpop.f32.mrf.mxu0
    %v245 = vadd.f32 0.0, %v244
    %v246 = vpop.f32.mrf.mxu0
    %247 = vmatprep.mubr.f32.mxu0 0.0
    %248 = vmatmul.mubr.f32.gmra.mxu0 %v119
    %v249 = vpop.f32.mrf.mxu0
    %v250 = vadd.f32 0.0, %v249
    %v251 = vpop.f32.mrf.mxu0
    %252 = vmatprep.mubr.f32.mxu0 0.0
    %253 = vmatmul.mubr.f32.gmra.mxu0 %v120
    %v254 = vpop.f32.mrf.mxu0
    %v255 = vadd.f32 0.0, %v254
    %v256 = vpop.f32.mrf.mxu0
    %257 = vmatprep.mubr.f32.mxu0 0.0
    %258 = vmatmul.mubr.f32.gmra.mxu0 %v121
    %v259 = vpop.f32.mrf.mxu0
    %v260 = vadd.f32 0.0, %v259
    %v261 = vpop.f32.mrf.mxu0
    %262 = vmatprep.mubr.f32.mxu0 0.0
    %263 = vmatmul.mubr.f32.gmra.mxu0 %v122
    %v264 = vpop.f32.mrf.mxu0
    %v265 = vadd.f32 0.0, %v264
    %v266 = vpop.f32.mrf.mxu0
    %267 = vmatprep.mubr.f32.mxu0 0.0
    %268 = vmatmul.mubr.f32.gmra.mxu0 %v123
    %v269 = vpop.f32.mrf.mxu0
    %v270 = vadd.f32 0.0, %v269
    %v271 = vpop.f32.mrf.mxu0
    %272 = vmatprep.mubr.f32.mxu0 0.0
    %273 = vmatmul.mubr.f32.gmra.mxu0 %v124
    %v274 = vpop.f32.mrf.mxu0
    %v275 = vadd.f32 0.0, %v274
    %v276 = vpop.f32.mrf.mxu0
    %277 = vmatprep.mubr.f32.mxu0 0.0
    %278 = vmatmul.mubr.f32.gmra.mxu0 %v125
    %v279 = vpop.f32.mrf.mxu0
    %v280 = vadd.f32 0.0, %v279
    %v281 = vpop.f32.mrf.mxu0
    %282 = vmatprep.mubr.f32.mxu0 0.0
    %283 = vmatmul.mubr.f32.gmra.mxu0 %v126
    %v284 = vpop.f32.mrf.mxu0
    %v285 = vadd.f32 0.0, %v284
    %v286 = vpop.f32.mrf.mxu0
    %287 = vdwg.mxu0
    %v288 = vsub.f32 %v210, 12.5
    %v289 = vsub.f32 %v215, 12.5
    %v290 = vsub.f32 %v220, 12.5
    %v291 = vsub.f32 %v225, 12.5
    %v292 = vsub.f32 %v230, 12.5
    %v293 = vsub.f32 %v235, 12.5
    %v294 = vsub.f32 %v240, 12.5
    %v295 = vsub.f32 %v245, 12.5
    %v296 = vsub.f32 %v250, 12.5
    %v297 = vsub.f32 %v255, 12.5
    %v298 = vsub.f32 %v260, 12.5
    %v299 = vsub.f32 %v265, 12.5
    %v300 = vsub.f32 %v270, 12.5
    %v301 = vsub.f32 %v275, 12.5
    %v302 = vsub.f32 %v280, 12.5
    %v303 = vsub.f32 %v285, 12.5
    %v304 = vmul.f32 %v288, 1.442695
    %v305 = vpow.pop %v304
    %v306 = vmul.f32 %v289, 1.442695
    %v307 = vpow.pop %v306
    %v308 = vmul.f32 %v290, 1.442695
    %v309 = vpow.pop %v308
    %v310 = vmul.f32 %v291, 1.442695
    %v311 = vpow.pop %v310
    %v312 = vmul.f32 %v292, 1.442695
    %v313 = vpow.pop %v312
    %v314 = vmul.f32 %v293, 1.442695
    %v315 = vpow.pop %v314
    %v316 = vmul.f32 %v294, 1.442695
    %v317 = vpow.pop %v316
    %v318 = vmul.f32 %v295, 1.442695
    %v319 = vpow.pop %v318
    %v320 = vmul.f32 %v296, 1.442695
    %v321 = vpow.pop %v320
    %v322 = vmul.f32 %v297, 1.442695
    %v323 = vpow.pop %v322
    %v324 = vmul.f32 %v298, 1.442695
    %v325 = vpow.pop %v324
    %v326 = vmul.f32 %v299, 1.442695
    %v327 = vpow.pop %v326
    %v328 = vmul.f32 %v300, 1.442695
    %v329 = vpow.pop %v328
    %v330 = vmul.f32 %v301, 1.442695
    %v331 = vpow.pop %v330
    %v332 = vmul.f32 %v302, 1.442695
    %v333 = vpow.pop %v332
    %v334 = vmul.f32 %v303, 1.442695
    %v335 = vpow.pop %v334
    %s336 = smul.u32 0, 128
    %s337 = smul.u32 0, 128
    %s338 = ssub.s32 %s336, %s337
    %v339 = vld [vmem:[#allocation2] sm:$0xff]
    %v340 = vld [vmem:[#allocation2 + $0x8] sm:$0xff]
    %v341 = vld [vmem:[#allocation2 + $0x10] sm:$0xff]
    %v342 = vld [vmem:[#allocation2 + $0x18] sm:$0xff]
    %v343 = vld [vmem:[#allocation2 + $0x20] sm:$0xff]
    %v344 = vld [vmem:[#allocation2 + $0x28] sm:$0xff]
    %v345 = vld [vmem:[#allocation2 + $0x30] sm:$0xff]
    %v346 = vld [vmem:[#allocation2 + $0x38] sm:$0xff]
    %v347 = vld [vmem:[#allocation2 + $0x40] sm:$0xff]
    %v348 = vld [vmem:[#allocation2 + $0x48] sm:$0xff]
    %v349 = vld [vmem:[#allocation2 + $0x50] sm:$0xff]
    %v350 = vld [vmem:[#allocation2 + $0x58] sm:$0xff]
    %v351 = vld [vmem:[#allocation2 + $0x60] sm:$0xff]
    %v352 = vld [vmem:[#allocation2 + $0x68] sm:$0xff]
    %v353 = vld [vmem:[#allocation2 + $0x70] sm:$0xff]
    %v354 = vld [vmem:[#allocation2 + $0x78] sm:$0xff]
    %v355 = vstv %s338
    %vm356 = vcmp.eq.s32.totalorder %v339, %v355
    %vm357 = vcmp.eq.s32.totalorder %v340, %v355
    %vm358 = vcmp.eq.s32.totalorder %v341, %v355
    %vm359 = vcmp.eq.s32.totalorder %v342, %v355
    %vm360 = vcmp.eq.s32.totalorder %v343, %v355
    %vm361 = vcmp.eq.s32.totalorder %v344, %v355
    %vm362 = vcmp.eq.s32.totalorder %v345, %v355
    %vm363 = vcmp.eq.s32.totalorder %v346, %v355
    %vm364 = vcmp.eq.s32.totalorder %v347, %v355
    %vm365 = vcmp.eq.s32.totalorder %v348, %v355
    %vm366 = vcmp.eq.s32.totalorder %v349, %v355
    %vm367 = vcmp.eq.s32.totalorder %v350, %v355
    %vm368 = vcmp.eq.s32.totalorder %v351, %v355
    %vm369 = vcmp.eq.s32.totalorder %v352, %v355
    %vm370 = vcmp.eq.s32.totalorder %v353, %v355
    %vm371 = vcmp.eq.s32.totalorder %v354, %v355
    %v372 = vsel %vm356, 0.0, %v305
    %v373 = vsel %vm357, 0.0, %v307
    %v374 = vsel %vm358, 0.0, %v309
    %v375 = vsel %vm359, 0.0, %v311
    %v376 = vsel %vm360, 0.0, %v313
    %v377 = vsel %vm361, 0.0, %v315
    %v378 = vsel %vm362, 0.0, %v317
    %v379 = vsel %vm363, 0.0, %v319
    %v380 = vsel %vm364, 0.0, %v321
    %v381 = vsel %vm365, 0.0, %v323
    %v382 = vsel %vm366, 0.0, %v325
    %v383 = vsel %vm367, 0.0, %v327
    %v384 = vsel %vm368, 0.0, %v329
    %v385 = vsel %vm369, 0.0, %v331
    %v386 = vsel %vm370, 0.0, %v333
    %v387 = vsel %vm371, 0.0, %v335
    %v388 = vld [vmem:[%s2] sm:$0xff]
    %v389 = vld [vmem:[%s2 + $0x8] sm:$0xff]
    %v390 = vld [vmem:[%s2 + $0x10] sm:$0xff]
    %v391 = vld [vmem:[%s2 + $0x18] sm:$0xff]
    %v392 = vld [vmem:[%s2 + $0x20] sm:$0xff]
    %v393 = vld [vmem:[%s2 + $0x28] sm:$0xff]
    %v394 = vld [vmem:[%s2 + $0x30] sm:$0xff]
    %v395 = vld [vmem:[%s2 + $0x38] sm:$0xff]
    %v396 = vld [vmem:[%s2 + $0x40] sm:$0xff]
    %v397 = vld [vmem:[%s2 + $0x48] sm:$0xff]
    %v398 = vld [vmem:[%s2 + $0x50] sm:$0xff]
    %v399 = vld [vmem:[%s2 + $0x58] sm:$0xff]
    %v400 = vld [vmem:[%s2 + $0x60] sm:$0xff]
    %v401 = vld [vmem:[%s2 + $0x68] sm:$0xff]
    %v402 = vld [vmem:[%s2 + $0x70] sm:$0xff]
    %v403 = vld [vmem:[%s2 + $0x78] sm:$0xff]
    %404 = vadd.xlane.f32.xlu0 %v372
    %v405 = vpop.xlane.xlu0 %404
    %406 = vadd.xlane.f32.xlu0 %v373
    %v407 = vpop.xlane.xlu0 %406
    %408 = vadd.xlane.f32.xlu0 %v374
    %v409 = vpop.xlane.xlu0 %408
    %410 = vadd.xlane.f32.xlu0 %v375
    %v411 = vpop.xlane.xlu0 %410
    %412 = vadd.xlane.f32.xlu0 %v376
    %v413 = vpop.xlane.xlu0 %412
    %414 = vadd.xlane.f32.xlu0 %v377
    %v415 = vpop.xlane.xlu0 %414
    %416 = vadd.xlane.f32.xlu0 %v378
    %v417 = vpop.xlane.xlu0 %416
    %418 = vadd.xlane.f32.xlu0 %v379
    %v419 = vpop.xlane.xlu0 %418
    %420 = vadd.xlane.f32.xlu0 %v380
    %v421 = vpop.xlane.xlu0 %420
    %422 = vadd.xlane.f32.xlu0 %v381
    %v423 = vpop.xlane.xlu0 %422
    %424 = vadd.xlane.f32.xlu0 %v382
    %v425 = vpop.xlane.xlu0 %424
    %426 = vadd.xlane.f32.xlu0 %v383
    %v427 = vpop.xlane.xlu0 %426
    %428 = vadd.xlane.f32.xlu0 %v384
    %v429 = vpop.xlane.xlu0 %428
    %430 = vadd.xlane.f32.xlu0 %v385
    %v431 = vpop.xlane.xlu0 %430
    %432 = vadd.xlane.f32.xlu0 %v386
    %v433 = vpop.xlane.xlu0 %432
    %434 = vadd.xlane.f32.xlu0 %v387
    %v435 = vpop.xlane.xlu0 %434
    %v436 = vadd.f32 %v388, %v405
    %v437 = vadd.f32 %v389, %v407
    %v438 = vadd.f32 %v390, %v409
    %v439 = vadd.f32 %v391, %v411
    %v440 = vadd.f32 %v392, %v413
    %v441 = vadd.f32 %v393, %v415
    %v442 = vadd.f32 %v394, %v417
    %v443 = vadd.f32 %v395, %v419
    %v444 = vadd.f32 %v396, %v421
    %v445 = vadd.f32 %v397, %v423
    %v446 = vadd.f32 %v398, %v425
    %v447 = vadd.f32 %v399, %v427
    %v448 = vadd.f32 %v400, %v429
    %v449 = vadd.f32 %v401, %v431
    %v450 = vadd.f32 %v402, %v433
    %v451 = vadd.f32 %v403, %v435
    %vm452 = vcmask 7168
    %453 = vst.msk [vmem:[%s2] sm:$0xff] %vm452, %v436
    %454 = vst.msk [vmem:[%s2 + $0x8] sm:$0xff] %vm452, %v437
    %455 = vst.msk [vmem:[%s2 + $0x10] sm:$0xff] %vm452, %v438
    %456 = vst.msk [vmem:[%s2 + $0x18] sm:$0xff] %vm452, %v439
    %457 = vst.msk [vmem:[%s2 + $0x20] sm:$0xff] %vm452, %v440
    %458 = vst.msk [vmem:[%s2 + $0x28] sm:$0xff] %vm452, %v441
    %459 = vst.msk [vmem:[%s2 + $0x30] sm:$0xff] %vm452, %v442
    %460 = vst.msk [vmem:[%s2 + $0x38] sm:$0xff] %vm452, %v443
    %461 = vst.msk [vmem:[%s2 + $0x40] sm:$0xff] %vm452, %v444
    %462 = vst.msk [vmem:[%s2 + $0x48] sm:$0xff] %vm452, %v445
    %463 = vst.msk [vmem:[%s2 + $0x50] sm:$0xff] %vm452, %v446
    %464 = vst.msk [vmem:[%s2 + $0x58] sm:$0xff] %vm452, %v447
    %465 = vst.msk [vmem:[%s2 + $0x60] sm:$0xff] %vm452, %v448
    %466 = vst.msk [vmem:[%s2 + $0x68] sm:$0xff] %vm452, %v449
    %467 = vst.msk [vmem:[%s2 + $0x70] sm:$0xff] %vm452, %v450
    %468 = vst.msk [vmem:[%s2 + $0x78] sm:$0xff] %vm452, %v451
    // Predicated region
    $region22: #{tpu_custom_call.1} parent=1 // pred_check
      %p469 = pneg %p39
    $region23: #{tpu_custom_call.1} parent=1 // pred_check_branch
      %471 = sbr.rel (%p469) target = $region25
    $region24: #{tpu_custom_call.1} parent=1 // pred_region
      %v472 = vld [vmem:[%s2] sm:$0xff]
      %v473 = vld [vmem:[%s2 + $0x8] sm:$0xff]
      %v474 = vld [vmem:[%s2 + $0x10] sm:$0xff]
      %v475 = vld [vmem:[%s2 + $0x18] sm:$0xff]
      %v476 = vld [vmem:[%s2 + $0x20] sm:$0xff]
      %v477 = vld [vmem:[%s2 + $0x28] sm:$0xff]
      %v478 = vld [vmem:[%s2 + $0x30] sm:$0xff]
      %v479 = vld [vmem:[%s2 + $0x38] sm:$0xff]
      %v480 = vld [vmem:[%s2 + $0x40] sm:$0xff]
      %v481 = vld [vmem:[%s2 + $0x48] sm:$0xff]
      %v482 = vld [vmem:[%s2 + $0x50] sm:$0xff]
      %v483 = vld [vmem:[%s2 + $0x58] sm:$0xff]
      %v484 = vld [vmem:[%s2 + $0x60] sm:$0xff]
      %v485 = vld [vmem:[%s2 + $0x68] sm:$0xff]
      %v486 = vld [vmem:[%s2 + $0x70] sm:$0xff]
      %v487 = vld [vmem:[%s2 + $0x78] sm:$0xff]
      %v488 = vsub.f32 %v472, 0.00041738516
      %v489 = vsub.f32 %v473, 0.00041738516
      %v490 = vsub.f32 %v474, 0.00041738516
      %v491 = vsub.f32 %v475, 0.00041738516
      %v492 = vsub.f32 %v476, 0.00041738516
      %v493 = vsub.f32 %v477, 0.00041738516
      %v494 = vsub.f32 %v478, 0.00041738516
      %v495 = vsub.f32 %v479, 0.00041738516
      %v496 = vsub.f32 %v480, 0.00041738516
      %v497 = vsub.f32 %v481, 0.00041738516
      %v498 = vsub.f32 %v482, 0.00041738516
      %v499 = vsub.f32 %v483, 0.00041738516
      %v500 = vsub.f32 %v484, 0.00041738516
      %v501 = vsub.f32 %v485, 0.00041738516
      %v502 = vsub.f32 %v486, 0.00041738516
      %v503 = vsub.f32 %v487, 0.00041738516
      %v504 = vmax.f32 %v488, 1e-30
      %v505 = vmax.f32 %v489, 1e-30
      %v506 = vmax.f32 %v490, 1e-30
      %v507 = vmax.f32 %v491, 1e-30
      %v508 = vmax.f32 %v492, 1e-30
      %v509 = vmax.f32 %v493, 1e-30
      %v510 = vmax.f32 %v494, 1e-30
      %v511 = vmax.f32 %v495, 1e-30
      %v512 = vmax.f32 %v496, 1e-30
      %v513 = vmax.f32 %v497, 1e-30
      %v514 = vmax.f32 %v498, 1e-30
      %v515 = vmax.f32 %v499, 1e-30
      %v516 = vmax.f32 %v500, 1e-30
      %v517 = vmax.f32 %v501, 1e-30
      %v518 = vmax.f32 %v502, 1e-30
      %v519 = vmax.f32 %v503, 1e-30
      %v520 = vlog2.pop %v504
      %v521 = vmul.f32 %v520, 0.6931472
      %v522 = vlog2.pop %v505
      %v523 = vmul.f32 %v522, 0.6931472
      %v524 = vlog2.pop %v506
      %v525 = vmul.f32 %v524, 0.6931472
      %v526 = vlog2.pop %v507
      %v527 = vmul.f32 %v526, 0.6931472
      %v528 = vlog2.pop %v508
      %v529 = vmul.f32 %v528, 0.6931472
      %v530 = vlog2.pop %v509
      %v531 = vmul.f32 %v530, 0.6931472
      %v532 = vlog2.pop %v510
      %v533 = vmul.f32 %v532, 0.6931472
      %v534 = vlog2.pop %v511
      %v535 = vmul.f32 %v534, 0.6931472
      %v536 = vlog2.pop %v512
      %v537 = vmul.f32 %v536, 0.6931472
      %v538 = vlog2.pop %v513
      %v539 = vmul.f32 %v538, 0.6931472
      %v540 = vlog2.pop %v514
      %v541 = vmul.f32 %v540, 0.6931472
      %v542 = vlog2.pop %v515
      %v543 = vmul.f32 %v542, 0.6931472
      %v544 = vlog2.pop %v516
      %v545 = vmul.f32 %v544, 0.6931472
      %v546 = vlog2.pop %v517
      %v547 = vmul.f32 %v546, 0.6931472
      %v548 = vlog2.pop %v518
      %v549 = vmul.f32 %v548, 0.6931472
      %v550 = vlog2.pop %v519
      %v551 = vmul.f32 %v550, 0.6931472
      %v552 = vadd.f32 %v521, 12.5
      %v553 = vadd.f32 %v523, 12.5
      %v554 = vadd.f32 %v525, 12.5
      %v555 = vadd.f32 %v527, 12.5
      %v556 = vadd.f32 %v529, 12.5
      %v557 = vadd.f32 %v531, 12.5
      %v558 = vadd.f32 %v533, 12.5
      %v559 = vadd.f32 %v535, 12.5
      %v560 = vadd.f32 %v537, 12.5
      %v561 = vadd.f32 %v539, 12.5
      %v562 = vadd.f32 %v541, 12.5
      %v563 = vadd.f32 %v543, 12.5
      %v564 = vadd.f32 %v545, 12.5
      %v565 = vadd.f32 %v547, 12.5
      %v566 = vadd.f32 %v549, 12.5
      %v567 = vadd.f32 %v551, 12.5
      %568 = vst.msk [vmem:[%s2] sm:$0xff] %vm452, %v552
      %569 = vst.msk [vmem:[%s2 + $0x8] sm:$0xff] %vm452, %v553
      %570 = vst.msk [vmem:[%s2 + $0x10] sm:$0xff] %vm452, %v554
      %571 = vst.msk [vmem:[%s2 + $0x18] sm:$0xff] %vm452, %v555
      %572 = vst.msk [vmem:[%s2 + $0x20] sm:$0xff] %vm452, %v556
      %573 = vst.msk [vmem:[%s2 + $0x28] sm:$0xff] %vm452, %v557
      %574 = vst.msk [vmem:[%s2 + $0x30] sm:$0xff] %vm452, %v558
      %575 = vst.msk [vmem:[%s2 + $0x38] sm:$0xff] %vm452, %v559
      %576 = vst.msk [vmem:[%s2 + $0x40] sm:$0xff] %vm452, %v560
      %577 = vst.msk [vmem:[%s2 + $0x48] sm:$0xff] %vm452, %v561
      %578 = vst.msk [vmem:[%s2 + $0x50] sm:$0xff] %vm452, %v562
      %579 = vst.msk [vmem:[%s2 + $0x58] sm:$0xff] %vm452, %v563
      %580 = vst.msk [vmem:[%s2 + $0x60] sm:$0xff] %vm452, %v564
      %581 = vst.msk [vmem:[%s2 + $0x68] sm:$0xff] %vm452, %v565
      %582 = vst.msk [vmem:[%s2 + $0x70] sm:$0xff] %vm452, %v566
      %583 = vst.msk [vmem:[%s2 + $0x78] sm:$0xff] %vm452, %v567
    $region25: #{tpu_custom_call.1} parent=1 // pred_fallthru
      _
    // Predicated region
    $region26: #{tpu_custom_call.1} parent=1 // pred_check
      _
    $region27: #{tpu_custom_call.1} parent=1 // pred_check_branch
      %585 = sbr.rel (0) target = $region29
    $region28: #{tpu_custom_call.1} parent=1 // pred_region
      _
    $region29: #{tpu_custom_call.1} parent=1 // pred_fallthru
      _
    // Predicated region
    $region30: #{tpu_custom_call.1} parent=1 // pred_check
      _
    $region31: #{tpu_custom_call.1} parent=1 // pred_check_branch
      %587 = sbr.rel (0) target = $region33
    $region32: #{tpu_custom_call.1} parent=1 // pred_region
      _
    $region33: #{tpu_custom_call.1} parent=1 // pred_fallthru
      _
    %588 = vsyncpa [#allocation4], 1
    %589 = vsyncpa [#allocation6], 1

</llo_original>
